<compile_context>
chip_gen: v5e
topology: v5e:2x2
jax: 0.10.0
libtpu: 0.0.40
codegen_flags: <defaults>
</compile_context>

<pallas_src>
import functools

import numpy as np
import jax
import jax.numpy as jnp
from jax.experimental import pallas as pl
from jax.experimental.pallas import tpu as pltpu


def _yolo_kernel(pred_ref, sig_scale_ref, exp_scale_ref, exp_premul_ref,
                 offset_ref, out_ref):
    """One batch element: pred block (1, A, C+6, GG) -> out (1, A, C+6, GG)."""
    p = pred_ref[0].astype(jnp.float32)                 # (A, cp, gg)
    s = jax.nn.sigmoid(p)                               # full-block EUP
    e = jnp.exp(p * exp_premul_ref[...])                # (1, cp, 1) premask
    out = (s * sig_scale_ref[...]                       # (A, cp, 1) lane-bcast
           + e * exp_scale_ref[...]                     # (A, cp, 1) lane-bcast
           + offset_ref[...])                           # (1, cp, gg)
    out_ref[0] = out.astype(out_ref.dtype)              # single unmasked store


def yolo_layer_forward(x, anchors, num_classes, img_dim, use_angle=True,
                       angle_range=360.0, return_channel_major=False):
    """Pallas implementation of YOLOLayer.forward (inference branch).

    x:       (N, A*(num_classes+6), G, G) float32 (NCHW, like the PyTorch module)
    anchors: (A, 2) float32 in image pixels
    returns: (N, A*G*G, num_classes+6) float32  (== torch `output`)
             or (N, A, num_classes+6, G*G) if return_channel_major=True.
    """
    N, c_total, G, G2 = x.shape
    assert G == G2
    A = anchors.shape[0]
    cp = num_classes + 6
    assert c_total == A * cp
    gg = G * G
    stride = float(img_dim) / float(G)

    # ---- precomputed constant tables (hoisted out of the kernel) ----
    # Grid offsets, pre-multiplied by stride.  Flat spatial index s over
    # row-major (G, G): x = s % G (column), y = s // G (row).
    s_idx = jnp.arange(gg, dtype=jnp.int32)
    gx = (s_idx % G).astype(jnp.float32) * stride
    gy = (s_idx // G).astype(jnp.float32) * stride
    offset = jnp.zeros((cp, gg), jnp.float32)
    offset = offset.at[0].set(gx).at[1].set(gy)
    if use_angle:
        offset = offset.at[4].set(-float(angle_range) / 2.0)
    offset = offset[None]                                      # (1, cp, gg)

    # Scale applied to sigmoid(p) per (anchor, row).
    sig_scale = jnp.ones((A, cp), jnp.float32)
    sig_scale = sig_scale.at[:, 0].set(stride).at[:, 1].set(stride)
    sig_scale = sig_scale.at[:, 2].set(0.0).at[:, 3].set(0.0)
    sig_scale = sig_scale.at[:, 4].set(float(angle_range) if use_angle else 0.0)
    sig_scale = sig_scale[..., None]                            # (A, cp, 1)

    # Scale applied to exp(p) per (anchor, row): raw anchors, since
    # scaled_anchor * stride == raw anchor (stride multiply folded).
    anchors = anchors.astype(jnp.float32)
    exp_scale = jnp.zeros((A, cp), jnp.float32)
    exp_scale = exp_scale.at[:, 2].set(anchors[:, 0])
    exp_scale = exp_scale.at[:, 3].set(anchors[:, 1])
    exp_scale = exp_scale[..., None]                            # (A, cp, 1)

    # Pre-multiplier inside exp(): 1 on w/h rows, 0 elsewhere (exp(0)=1, which
    # is then zeroed by exp_scale; avoids inf*0 on large conf/cls logits).
    exp_premul = jnp.zeros((cp,), jnp.float32).at[2].set(1.0).at[3].set(1.0)
    exp_premul = exp_premul[None, :, None]                      # (1, cp, 1)

    # Glue: NCHW -> (N, A, C+6, G*G); spatial flattened onto lanes.
    pred = x.reshape(N, A, cp, gg)

    # VMEM budget: double-buffered in/out blocks + resident tables, capped at
    # 48 MiB so it also fits v7x's 64 MiB per-core VMEM.
    block_bytes = A * cp * gg * 4
    resident_bytes = cp * gg * 4 + 3 * A * cp * 4
    vmem_limit = int(min(max(4 * block_bytes + resident_bytes + (2 << 20),
                             16 << 20), 48 << 20))
    # TODO(synk): for very large G / num_classes where one (A, cp, GG) block
    # exceeds the 48 MiB budget, add a second grid axis tiling GG into
    # >=512-lane chunks.

    out = pl.pallas_call(
        _yolo_kernel,
        out_shape=jax.ShapeDtypeStruct((N, A, cp, gg), jnp.float32),
        grid_spec=pltpu.PrefetchScalarGridSpec(
            num_scalar_prefetch=0,
            grid=(N,),
            in_specs=[
                pl.BlockSpec((1, A, cp, gg), lambda n: (n, 0, 0, 0)),
                pl.BlockSpec((A, cp, 1), lambda n: (0, 0, 0)),   # sig_scale
                pl.BlockSpec((A, cp, 1), lambda n: (0, 0, 0)),   # exp_scale
                pl.BlockSpec((1, cp, 1), lambda n: (0, 0, 0)),   # exp_premul
                pl.BlockSpec((1, cp, gg), lambda n: (0, 0, 0)),  # offsets
            ],
            out_specs=pl.BlockSpec((1, A, cp, gg), lambda n: (n, 0, 0, 0)),
        ),
        compiler_params=pltpu.CompilerParams(
            dimension_semantics=("parallel",),
            vmem_limit_bytes=vmem_limit),
    )(pred, sig_scale, exp_scale, exp_premul, offset)

    if return_channel_major:
        # Consumer reads channel-major (N, A, C+6, GG); skip the extra
        # HBM round trip of the transpose below.
        return out

    # Glue: (N, A, C+6, G*G) -> (N, A*G*G, C+6)  (matches torch output layout)
    output = out.transpose(0, 1, 3, 2).reshape(N, A * gg, cp)
    return output

    # TODO(synk): training branch (build_targets + MSE/BCE/rotation losses) and
    # uda_method='minent' branch use external helpers / data-dependent
    # torch.where filtering and are not part of this inference kernel.


def yolo_reference(x, anchors, num_classes, img_dim, use_angle=True,
                   angle_range=360.0):
    """Pure-JAX port of the PyTorch forward (inference branch) for verification."""
    N, _, G, _ = x.shape
    A = anchors.shape[0]
    cp = num_classes + 6
    stride = float(img_dim) / float(G)
    pred = x.reshape(N, A, cp, G, G).transpose(0, 1, 3, 4, 2)     # (N,A,G,G,C+6)
    xc = jax.nn.sigmoid(pred[..., 0])
    yc = jax.nn.sigmoid(pred[..., 1])
    w = pred[..., 2]
    h = pred[..., 3]
    ang = jax.nn.sigmoid(pred[..., 4])
    conf = jax.nn.sigmoid(pred[..., 5])
    cls = jax.nn.sigmoid(pred[..., 6:])
    grid_x = jnp.arange(G, dtype=jnp.float32).reshape(1, 1, 1, G)
    grid_y = jnp.arange(G, dtype=jnp.float32).reshape(1, 1, G, 1)
    scaled = anchors / stride
    aw = scaled[:, 0].reshape(1, A, 1, 1)
    ah = scaled[:, 1].reshape(1, A, 1, 1)
    bx = xc + grid_x
    by = yc + grid_y
    bw = jnp.exp(w) * aw
    bh = jnp.exp(h) * ah
    if use_angle:
        bang = ang * angle_range - angle_range / 2.0
    else:
        bang = jnp.zeros_like(ang)
    boxes = jnp.stack([bx * stride, by * stride, bw * stride, bh * stride, bang],
                      axis=-1)
    output = jnp.concatenate(
        [boxes.reshape(N, -1, 5), conf.reshape(N, -1, 1),
         cls.reshape(N, -1, num_classes)], axis=-1)
    return output


if __name__ == "__main__":
    key = jax.random.PRNGKey(0)
    N = 2
    num_classes = 2
    G = 16
    img_dim = 128  # stride = 8
    anchors = jnp.array([[10.0, 13.0], [16.0, 30.0], [33.0, 23.0]],
                        dtype=jnp.float32)
    A = anchors.shape[0]
    c_total = A * (num_classes + 6)

    x = jax.random.normal(key, (N, c_total, G, G), dtype=jnp.float32)

    # use_angle=True path
    out = yolo_layer_forward(x, anchors, num_classes, img_dim, use_angle=True)
    out = jax.block_until_ready(out)
    ref = yolo_reference(x, anchors, num_classes, img_dim, use_angle=True)
    np.testing.assert_allclose(np.asarray(out), np.asarray(ref),
                               rtol=1e-5, atol=1e-5)

    # use_angle=False path
    out_na = yolo_layer_forward(x, anchors, num_classes, img_dim, use_angle=False)
    out_na = jax.block_until_ready(out_na)
    ref_na = yolo_reference(x, anchors, num_classes, img_dim, use_angle=False)
    np.testing.assert_allclose(np.asarray(out_na), np.asarray(ref_na),
                               rtol=1e-5, atol=1e-5)

    print("KERNEL_OK")
</pallas_src>

<mosaic_0001>
module attributes {stable_mosaic.version = 11 : i64} {
  func.func @_yolo_kernel(%arg0: i32, %arg1: memref<1x3x8x256xf32, #tpu.memory_space<vmem>>, %arg2: memref<3x8x1xf32, #tpu.memory_space<vmem>>, %arg3: memref<3x8x1xf32, #tpu.memory_space<vmem>>, %arg4: memref<1x8x1xf32, #tpu.memory_space<vmem>>, %arg5: memref<1x8x256xf32, #tpu.memory_space<vmem>>, %arg6: memref<1x3x8x256xf32, #tpu.memory_space<vmem>>) attributes {dimension_semantics = [#tpu.dimension_semantics<parallel>], iteration_bounds = array<i64: 2>, scalar_prefetch = 0 : i64, scratch_operands = 0 : i64, tpu.core_type = #tpu.core_type<tc>, window_params = [{transform_indices = @transform_0, window_bounds = array<i64: 1, 3, 8, 256>}, {pipeline_mode = #tpu.pipeline_mode<synchronous>, transform_indices = @transform_1, window_bounds = array<i64: 3, 8, 1>}, {pipeline_mode = #tpu.pipeline_mode<synchronous>, transform_indices = @transform_2, window_bounds = array<i64: 3, 8, 1>}, {pipeline_mode = #tpu.pipeline_mode<synchronous>, transform_indices = @transform_3, window_bounds = array<i64: 1, 8, 1>}, {pipeline_mode = #tpu.pipeline_mode<synchronous>, transform_indices = @transform_4, window_bounds = array<i64: 1, 8, 256>}, {transform_indices = @transform_5, window_bounds = array<i64: 1, 3, 8, 256>}]} {
    %c0 = arith.constant 0 : index
    %c0_0 = arith.constant 0 : index
    %c0_1 = arith.constant 0 : index
    %c0_2 = arith.constant 0 : index
    %0 = vector.load %arg1[%c0, %c0_0, %c0_1, %c0_2] : memref<1x3x8x256xf32, #tpu.memory_space<vmem>>, vector<1x3x8x256xf32>
    %1 = vector.shape_cast %0 : vector<1x3x8x256xf32> to vector<3x8x256xf32>
    %2 = arith.negf %1 : vector<3x8x256xf32>
    %3 = math.exp %2 : vector<3x8x256xf32>
    %cst = arith.constant 1.000000e+00 : f32
    %4 = vector.broadcast %cst : f32 to vector<3x8x256xf32>
    %5 = arith.addf %4, %3 : vector<3x8x256xf32>
    %6 = arith.divf %4, %5 : vector<3x8x256xf32>
    %c0_3 = arith.constant 0 : index
    %c0_4 = arith.constant 0 : index
    %c0_5 = arith.constant 0 : index
    %7 = vector.load %arg4[%c0_3, %c0_4, %c0_5] : memref<1x8x1xf32, #tpu.memory_space<vmem>>, vector<1x8x1xf32>
    %8 = vector.broadcast %7 : vector<1x8x1xf32> to vector<3x8x256xf32>
    %9 = arith.mulf %1, %8 : vector<3x8x256xf32>
    %10 = math.exp %9 : vector<3x8x256xf32>
    %c0_6 = arith.constant 0 : index
    %c0_7 = arith.constant 0 : index
    %c0_8 = arith.constant 0 : index
    %11 = vector.load %arg2[%c0_6, %c0_7, %c0_8] : memref<3x8x1xf32, #tpu.memory_space<vmem>>, vector<3x8x1xf32>
    %12 = vector.broadcast %11 : vector<3x8x1xf32> to vector<3x8x256xf32>
    %13 = arith.mulf %6, %12 : vector<3x8x256xf32>
    %c0_9 = arith.constant 0 : index
    %c0_10 = arith.constant 0 : index
    %c0_11 = arith.constant 0 : index
    %14 = vector.load %arg3[%c0_9, %c0_10, %c0_11] : memref<3x8x1xf32, #tpu.memory_space<vmem>>, vector<3x8x1xf32>
    %15 = vector.broadcast %14 : vector<3x8x1xf32> to vector<3x8x256xf32>
    %16 = arith.mulf %10, %15 : vector<3x8x256xf32>
    %17 = arith.addf %13, %16 : vector<3x8x256xf32>
    %c0_12 = arith.constant 0 : index
    %c0_13 = arith.constant 0 : index
    %c0_14 = arith.constant 0 : index
    %18 = vector.load %arg5[%c0_12, %c0_13, %c0_14] : memref<1x8x256xf32, #tpu.memory_space<vmem>>, vector<1x8x256xf32>
    %19 = vector.broadcast %18 : vector<1x8x256xf32> to vector<3x8x256xf32>
    %20 = arith.addf %17, %19 : vector<3x8x256xf32>
    %c0_15 = arith.constant 0 : index
    %c0_16 = arith.constant 0 : index
    %c0_17 = arith.constant 0 : index
    %c0_18 = arith.constant 0 : index
    %21 = vector.load %arg6[%c0_15, %c0_16, %c0_17, %c0_18] : memref<1x3x8x256xf32, #tpu.memory_space<vmem>>, vector<1x3x8x256xf32>
    %22 = vector.shape_cast %21 : vector<1x3x8x256xf32> to vector<3x8x256xf32>
    %23 = vector.shape_cast %20 : vector<3x8x256xf32> to vector<1x3x8x256xf32>
    tpu.vector_store %arg6[%c0_15, %c0_16, %c0_17, %c0_18], %23 {strides = array<i32>} : memref<1x3x8x256xf32, #tpu.memory_space<vmem>>, vector<1x3x8x256xf32>,
    return
  }
  func.func @transform_0(%arg0: i32) -> (i32, i32, i32, i32) {
    %c0_i32 = arith.constant 0 : i32
    %c0_i32_0 = arith.constant 0 : i32
    %c0_i32_1 = arith.constant 0 : i32
    %c0_i32_2 = arith.constant 0 : i32
    return %arg0, %c0_i32, %c0_i32_0, %c0_i32_1 : i32, i32, i32, i32
  }
  func.func @transform_1(%arg0: i32) -> (i32, i32, i32) {
    %c0_i32 = arith.constant 0 : i32
    %c0_i32_0 = arith.constant 0 : i32
    %c0_i32_1 = arith.constant 0 : i32
    %c0_i32_2 = arith.constant 0 : i32
    return %c0_i32, %c0_i32_0, %c0_i32_1 : i32, i32, i32
  }
  func.func @transform_2(%arg0: i32) -> (i32, i32, i32) {
    %c0_i32 = arith.constant 0 : i32
    %c0_i32_0 = arith.constant 0 : i32
    %c0_i32_1 = arith.constant 0 : i32
    %c0_i32_2 = arith.constant 0 : i32
    return %c0_i32, %c0_i32_0, %c0_i32_1 : i32, i32, i32
  }
  func.func @transform_3(%arg0: i32) -> (i32, i32, i32) {
    %c0_i32 = arith.constant 0 : i32
    %c0_i32_0 = arith.constant 0 : i32
    %c0_i32_1 = arith.constant 0 : i32
    %c0_i32_2 = arith.constant 0 : i32
    return %c0_i32, %c0_i32_0, %c0_i32_1 : i32, i32, i32
  }
  func.func @transform_4(%arg0: i32) -> (i32, i32, i32) {
    %c0_i32 = arith.constant 0 : i32
    %c0_i32_0 = arith.constant 0 : i32
    %c0_i32_1 = arith.constant 0 : i32
    %c0_i32_2 = arith.constant 0 : i32
    return %c0_i32, %c0_i32_0, %c0_i32_1 : i32, i32, i32
  }
  func.func @transform_5(%arg0: i32) -> (i32, i32, i32, i32) {
    %c0_i32 = arith.constant 0 : i32
    %c0_i32_0 = arith.constant 0 : i32
    %c0_i32_1 = arith.constant 0 : i32
    %c0_i32_2 = arith.constant 0 : i32
    return %arg0, %c0_i32, %c0_i32_0, %c0_i32_1 : i32, i32, i32, i32
  }
}

</mosaic_0001>

<llo_original>
// kernel: tpu_custom_call.1
$region0: #{tpu_custom_call.1}
  #allocation0 [shape = 'u32[]', space=smem, size = 0x4, offset = 0x4, fixed_abs, tag = 'smem constant byte address 0x4 - core index']
  #allocation1 [shape = 'u32[72,128]{1,0:T(1,128)}', space=vmem, size = 0x9000, scoped, tag = 'internal scratch']
  %s0 = inlined_call_operand.hbm [shape: f32[2,3,8,256], index: 0, kind: input, shape index: {}]
  %s1 = inlined_call_operand.vmem [shape: f32[3,8,1], index: 1, kind: input, shape index: {}]
  %s2 = inlined_call_operand.vmem [shape: f32[3,8,1], index: 2, kind: input, shape index: {}]
  %s3 = inlined_call_operand.vmem [shape: f32[1,8,1], index: 3, kind: input, shape index: {}]
  %s4 = inlined_call_operand.vmem [shape: f32[1,8,256], index: 4, kind: input, shape index: {}]
  %s5 = inlined_call_operand.hbm [shape: f32[2,3,8,256], index: 5, kind: output, shape index: {}]
  %s6 = sld [smem:[#allocation0]]
  $region57: #{tpu_custom_call.1} parent=0
    _
  %s8 = ssub.s32 1, %s6
  %s9 = scalar_select 0, %s8, %s6
  $region1: #{tpu_custom_call.1} parent=0
    #allocation2 [shape = 'u8[49152]{0}', space=vmem, size = 0xc000, scoped, tag = 'input window, operand 0']
    #allocation3 [shape = 's32[2]{0}', space=sflag, size = 0x8, scoped, tag = 'scoped memory for tpu_custom_call.1']
    #allocation4 [shape = 's32[2]{0}', space=sflag, size = 0x8, scoped, tag = 'scoped memory for tpu_custom_call.1']
    #allocation5 [shape = 'u8[49152]{0}', space=vmem, size = 0xc000, scoped, tag = 'output window, operand 0']
    %10 = vsyncpa [#allocation3], 0
    %s11 = scalar_lea.sflag [#allocation3], 1
    %12 = vsyncpa %s11, 0
    %13 = vsyncpa [#allocation4], 0
    %s14 = scalar_lea.sflag [#allocation4], 1
    %15 = vsyncpa %s14, 0
    loop: start=0, step=1, limit=4
    $region2: #{tpu_custom_call.1} parent=1 // loop_pre_header
      _
    $region3: #{tpu_custom_call.1} parent=1 // loop_header
      %s17 = sphi 0, %s21
      %p18 = scmp.ge.s32.totalorder %s17, 4
      %s27 = sphi 0, %s29
      %s30 = sphi 0, %s27
      %s31 = sphi 0, %s30
      %s47 = sphi 0, %s31
      %s51 = sphi 0, %s51
      %s53 = sphi 0, %s51
      %s54 = sphi 0, %s53
      %s68 = sphi 0, %s54
      %s72 = sphi 0, %s72
      %s74 = sphi 0, %s72
      %s75 = sphi 0, %s74
      %s89 = sphi 0, %s75
      %s93 = sphi 0, %s93
      %s95 = sphi 0, %s93
      %s96 = sphi 0, %s95
      %s110 = sphi 0, %s96
      %s114 = sphi 0, %s114
      %s116 = sphi 0, %s114
      %s117 = sphi 0, %s116
      %s131 = sphi 0, %s117
      %s137 = sphi 0, %s139
      %s140 = sphi 0, %s137
      %s141 = sphi 0, %s140
      %s157 = sphi 0, %s141
    $region4: #{tpu_custom_call.1} parent=1 // loop_header_branch
      %20 = sbr.rel (%p18) target = $region8
    $region5: #{tpu_custom_call.1} parent=1 // loop_body
      %s22 = ssub.s32 %s17, 1
      %s23 = ssub.s32 %s17, 2
      %s24 = sadd.s32 %s17, 1
      %s25 = ssub.s32 %s17, %s24
      %p26 = scmp.eq.s32.totalorder %s25, 0
      %s28 = sadd.s32 %s27, 1
      %s29 = scalar_select %p26, %s27, %s28
      %p32 = pneg %p26
      %p33 = scmp.eq.s32.totalorder %s17, 1
      %p34 = por %p32, %p33
      %p35 = scmp.ne.s32.totalorder %s27, %s30
      %p36 = scmp.eq.s32.totalorder %s17, 0
      %p37 = por %p35, %p36
      %p38 = scmp.ne.s32.totalorder %s27, %s30
      %p39 = scmp.eq.s32.totalorder %s22, 1
      %p40 = por %p38, %p39
      %p41 = scmp.ne.s32.totalorder %s30, %s31
      %p42 = scmp.eq.s32.totalorder %s22, 0
      %p43 = por %p41, %p42
      %p44 = scmp.ne.s32.totalorder %s30, %s31
      %p45 = scmp.eq.s32.totalorder %s23, 1
      %p46 = por %p44, %p45
      %p48 = scmp.ne.s32.totalorder %s31, %s47
      %p49 = scmp.eq.s32.totalorder %s23, 0
      %p50 = por %p48, %p49
      %s52 = sadd.s32 %s51, 1
      %p55 = scmp.eq.s32.totalorder %s17, 1
      %p56 = scmp.ne.s32.totalorder %s51, %s53
      %p57 = scmp.eq.s32.totalorder %s17, 0
      %p58 = por %p56, %p57
      %p59 = scmp.ne.s32.totalorder %s51, %s53
      %p60 = scmp.eq.s32.totalorder %s22, 1
      %p61 = por %p59, %p60
      %p62 = scmp.ne.s32.totalorder %s53, %s54
      %p63 = scmp.eq.s32.totalorder %s22, 0
      %p64 = por %p62, %p63
      %p65 = scmp.ne.s32.totalorder %s53, %s54
      %p66 = scmp.eq.s32.totalorder %s23, 1
      %p67 = por %p65, %p66
      %p69 = scmp.ne.s32.totalorder %s54, %s68
      %p70 = scmp.eq.s32.totalorder %s23, 0
      %p71 = por %p69, %p70
      %s73 = sadd.s32 %s72, 1
      %p76 = scmp.eq.s32.totalorder %s17, 1
      %p77 = scmp.ne.s32.totalorder %s72, %s74
      %p78 = scmp.eq.s32.totalorder %s17, 0
      %p79 = por %p77, %p78
      %p80 = scmp.ne.s32.totalorder %s72, %s74
      %p81 = scmp.eq.s32.totalorder %s22, 1
      %p82 = por %p80, %p81
      %p83 = scmp.ne.s32.totalorder %s74, %s75
      %p84 = scmp.eq.s32.totalorder %s22, 0
      %p85 = por %p83, %p84
      %p86 = scmp.ne.s32.totalorder %s74, %s75
      %p87 = scmp.eq.s32.totalorder %s23, 1
      %p88 = por %p86, %p87
      %p90 = scmp.ne.s32.totalorder %s75, %s89
      %p91 = scmp.eq.s32.totalorder %s23, 0
      %p92 = por %p90, %p91
      %s94 = sadd.s32 %s93, 1
      %p97 = scmp.eq.s32.totalorder %s17, 1
      %p98 = scmp.ne.s32.totalorder %s93, %s95
      %p99 = scmp.eq.s32.totalorder %s17, 0
      %p100 = por %p98, %p99
      %p101 = scmp.ne.s32.totalorder %s93, %s95
      %p102 = scmp.eq.s32.totalorder %s22, 1
      %p103 = por %p101, %p102
      %p104 = scmp.ne.s32.totalorder %s95, %s96
      %p105 = scmp.eq.s32.totalorder %s22, 0
      %p106 = por %p104, %p105
      %p107 = scmp.ne.s32.totalorder %s95, %s96
      %p108 = scmp.eq.s32.totalorder %s23, 1
      %p109 = por %p107, %p108
      %p111 = scmp.ne.s32.totalorder %s96, %s110
      %p112 = scmp.eq.s32.totalorder %s23, 0
      %p113 = por %p111, %p112
      %s115 = sadd.s32 %s114, 1
      %p118 = scmp.eq.s32.totalorder %s17, 1
      %p119 = scmp.ne.s32.totalorder %s114, %s116
      %p120 = scmp.eq.s32.totalorder %s17, 0
      %p121 = por %p119, %p120
      %p122 = scmp.ne.s32.totalorder %s114, %s116
      %p123 = scmp.eq.s32.totalorder %s22, 1
      %p124 = por %p122, %p123
      %p125 = scmp.ne.s32.totalorder %s116, %s117
      %p126 = scmp.eq.s32.totalorder %s22, 0
      %p127 = por %p125, %p126
      %p128 = scmp.ne.s32.totalorder %s116, %s117
      %p129 = scmp.eq.s32.totalorder %s23, 1
      %p130 = por %p128, %p129
      %p132 = scmp.ne.s32.totalorder %s117, %s131
      %p133 = scmp.eq.s32.totalorder %s23, 0
      %p134 = por %p132, %p133
      %s135 = ssub.s32 %s17, %s24
      %p136 = scmp.eq.s32.totalorder %s135, 0
      %s138 = sadd.s32 %s137, 1
      %s139 = scalar_select %p136, %s137, %s138
      %p142 = pneg %p136
      %p143 = scmp.eq.s32.totalorder %s17, 1
      %p144 = por %p142, %p143
      %p145 = scmp.ne.s32.totalorder %s137, %s140
      %p146 = scmp.eq.s32.totalorder %s17, 0
      %p147 = por %p145, %p146
      %p148 = scmp.ne.s32.totalorder %s137, %s140
      %p149 = scmp.eq.s32.totalorder %s22, 1
      %p150 = por %p148, %p149
      %p151 = scmp.ne.s32.totalorder %s140, %s141
      %p152 = scmp.eq.s32.totalorder %s22, 0
      %p153 = por %p151, %p152
      %p154 = scmp.ne.s32.totalorder %s140, %s141
      %p155 = scmp.eq.s32.totalorder %s23, 1
      %p156 = por %p154, %p155
      %p158 = scmp.ne.s32.totalorder %s141, %s157
      %p159 = scmp.eq.s32.totalorder %s23, 0
      %p160 = por %p158, %p159
      %p161 = scmp.le.s32.totalorder 1, %s17
      %p162 = scmp.lt.s32.totalorder %s17, 3
      %p163 = pnand %p161, %p162
      %p164 = pneg %p163
      // Predicated region
      $region9: #{tpu_custom_call.1} parent=5 // pred_check
        _
      $region10: #{tpu_custom_call.1} parent=5 // pred_check_branch
        %166 = sbr.rel (%p163) target = $region12
      $region11: #{tpu_custom_call.1} parent=5 // pred_region
        %s167 = ssub.s32 %s17, 1
        // Predicated region
        $region13: #{tpu_custom_call.1} parent=11 // pred_check
          %p168 = pneg %p64
        $region14: #{tpu_custom_call.1} parent=11 // pred_check_branch
          %170 = sbr.rel (%p168) target = $region16
        $region15: #{tpu_custom_call.1} parent=11 // pred_region
          _
        $region16: #{tpu_custom_call.1} parent=11 // pred_fallthru
          _
        // Predicated region
        $region17: #{tpu_custom_call.1} parent=11 // pred_check
          %p171 = pneg %p85
        $region18: #{tpu_custom_call.1} parent=11 // pred_check_branch
          %173 = sbr.rel (%p171) target = $region20
        $region19: #{tpu_custom_call.1} parent=11 // pred_region
          _
        $region20: #{tpu_custom_call.1} parent=11 // pred_fallthru
          _
        // Predicated region
        $region21: #{tpu_custom_call.1} parent=11 // pred_check
          %p174 = pneg %p106
        $region22: #{tpu_custom_call.1} parent=11 // pred_check_branch
          %176 = sbr.rel (%p174) target = $region24
        $region23: #{tpu_custom_call.1} parent=11 // pred_region
          _
        $region24: #{tpu_custom_call.1} parent=11 // pred_fallthru
          _
        // Predicated region
        $region25: #{tpu_custom_call.1} parent=11 // pred_check
          %p177 = pneg %p127
        $region26: #{tpu_custom_call.1} parent=11 // pred_check_branch
          %179 = sbr.rel (%p177) target = $region28
        $region27: #{tpu_custom_call.1} parent=11 // pred_region
          _
        $region28: #{tpu_custom_call.1} parent=11 // pred_fallthru
          _
      $region12: #{tpu_custom_call.1} parent=5 // pred_fallthru
        _
      %p180 = scmp.lt.s32.totalorder %s17, 2
      // Predicated region
      $region29: #{tpu_custom_call.1} parent=5 // pred_check
        %p181 = pneg %p180
      $region30: #{tpu_custom_call.1} parent=5 // pred_check_branch
        %183 = sbr.rel (%p181) target = $region32
      $region31: #{tpu_custom_call.1} parent=5 // pred_region
        // Predicated region
        $region33: #{tpu_custom_call.1} parent=31 // pred_check
          %p184 = pneg %p37
        $region34: #{tpu_custom_call.1} parent=31 // pred_check_branch
          %186 = sbr.rel (%p184) target = $region36
        $region35: #{tpu_custom_call.1} parent=31 // pred_region
          %s187 = sand.u32 %s27, 1
          %s188 = scalar_lea.sflag [#allocation3], %s187
          %s189 = sand.u32 %s27, 1
          %s190 = smul.addr %s189, 48
          %s191 = scalar_lea.vmem [#allocation2], %s190
          %193 = vsyncadd %s188, 0
          %s194 = smul.addr %s17, 6
          %s195 = smul.addr %s194, 8
          %s196 = scalar_lea.hbm %s0, %s195
          %s197 = sshll.u32 %s196, 4
          %s198 = int_to_ptr.hbm [resolvable:$true] %s197
          %s199 = sshll.u32 %s191, 4
          %s200 = int_to_ptr.vmem [resolvable:$true] %s199
          %205 = dma.hbm_to_vmem [thread:$0]  %s198, 768, %s200, %s188, 256, 256, 16
        $region36: #{tpu_custom_call.1} parent=31 // pred_fallthru
          _
      $region32: #{tpu_custom_call.1} parent=5 // pred_fallthru
        _
      %p206 = scmp.le.s32.totalorder 1, %s17
      %p207 = scmp.lt.s32.totalorder %s17, 3
      %p208 = pnand %p206, %p207
      %p209 = pneg %p208
      // Predicated region
      $region37: #{tpu_custom_call.1} parent=5 // pred_check
        _
      $region38: #{tpu_custom_call.1} parent=5 // pred_check_branch
        %211 = sbr.rel (%p208) target = $region40
      $region39: #{tpu_custom_call.1} parent=5 // pred_region
        %s212 = ssub.s32 %s17, 1
        %s213 = sand.u32 %s30, 1
        %s214 = scalar_lea.sflag [#allocation3], %s213
        %s215 = sand.u32 %s30, 1
        %s216 = smul.addr %s215, 48
        %s217 = scalar_lea.vmem [#allocation2], %s216
        // Predicated region
        $region41: #{tpu_custom_call.1} parent=39 // pred_check
          %p218 = pneg %p43
        $region42: #{tpu_custom_call.1} parent=39 // pred_check_branch
          %220 = sbr.rel (%p218) target = $region44
        $region43: #{tpu_custom_call.1} parent=39 // pred_region
          %222 = dma.done %s214, 768
        $region44: #{tpu_custom_call.1} parent=39 // pred_fallthru
          _
        %s223 = sand.u32 %s30, 1
        %s224 = scalar_lea.sflag [#allocation3], %s223
        %s225 = sand.u32 %s30, 1
        %s226 = smul.addr %s225, 48
        %s227 = scalar_lea.vmem [#allocation2], %s226
        %p228 = pneg %p43
        %p229 = pneg %p40
        %p230 = pneg %p64
        %p231 = pneg %p61
        %p232 = pneg %p85
        %p233 = pneg %p82
        %p234 = pneg %p106
        %p235 = pneg %p103
        %p236 = pneg %p127
        %p237 = pneg %p124
        %p238 = pneg %p153
        %p239 = pneg %p150
        %s240 = sand.u32 %s140, 1
        %s241 = scalar_lea.sflag [#allocation4], %s240
        %s242 = sand.u32 %s140, 1
        %s243 = smul.addr %s242, 48
        %s244 = scalar_lea.vmem [#allocation5], %s243
        %v245 = vld [vmem:[%s217] sm:$0xff]
        %v246 = vld [vmem:[%s217 + $0x8] sm:$0xff]
        %v247 = vld [vmem:[%s217 + $0x10] sm:$0xff]
        %v248 = vld [vmem:[%s217 + $0x18] sm:$0xff]
        %v249 = vld [vmem:[%s217 + $0x20] sm:$0xff]
        %v250 = vld [vmem:[%s217 + $0x28] sm:$0xff]
        %v251 = vxor.u32 %v245, 2147483648
        %v252 = vxor.u32 %v246, 2147483648
        %v253 = vxor.u32 %v247, 2147483648
        %v254 = vxor.u32 %v248, 2147483648
        %v255 = vxor.u32 %v249, 2147483648
        %v256 = vxor.u32 %v250, 2147483648
        %v257 = vmul.f32 %v251, 1.442695
        %v258 = vpow.pop %v257
        %v259 = vmul.f32 %v252, 1.442695
        %v260 = vpow.pop %v259
        %v261 = vmul.f32 %v253, 1.442695
        %v262 = vpow.pop %v261
        %v263 = vmul.f32 %v254, 1.442695
        %v264 = vpow.pop %v263
        %v265 = vmul.f32 %v255, 1.442695
        %v266 = vpow.pop %v265
        %v267 = vmul.f32 %v256, 1.442695
        %v268 = vpow.pop %v267
        %v269 = vadd.f32 %v258, 1.0
        %v270 = vadd.f32 %v260, 1.0
        %v271 = vadd.f32 %v262, 1.0
        %v272 = vadd.f32 %v264, 1.0
        %v273 = vadd.f32 %v266, 1.0
        %v274 = vadd.f32 %v268, 1.0
        %v275 = vrcp.pop %v269
        %v276 = vmul.f32 %v269, %v275
        %v277 = vsub.f32 1.0, %v276
        %v278 = vmul.f32 %v275, %v277
        %v279 = vadd.f32 %v275, %v278
        %vm280 = vweird.f32 %v269
        %vm281 = vweird.f32 %v275
        %vm282 = vmor %vm280, %vm281
        %v283 = vsel %vm282, %v275, %v279
        %v284 = vand.u32 2147483647, %v269
        %vm285 = vcmp.eq.f32.partialorder %v284, 8.507059e+37
        %v286 = vand.u32 %v269, 2147483648
        %v287 = vor.u32 1.1754944e-38, %v286
        %v288 = vsel %vm285, %v287, %v283
        %v289 = vmul.f32 1.0, %v288
        %v290 = vrcp.pop %v270
        %v291 = vmul.f32 %v270, %v290
        %v292 = vsub.f32 1.0, %v291
        %v293 = vmul.f32 %v290, %v292
        %v294 = vadd.f32 %v290, %v293
        %vm295 = vweird.f32 %v270
        %vm296 = vweird.f32 %v290
        %vm297 = vmor %vm295, %vm296
        %v298 = vsel %vm297, %v290, %v294
        %v299 = vand.u32 2147483647, %v270
        %vm300 = vcmp.eq.f32.partialorder %v299, 8.507059e+37
        %v301 = vand.u32 %v270, 2147483648
        %v302 = vor.u32 1.1754944e-38, %v301
        %v303 = vsel %vm300, %v302, %v298
        %v304 = vmul.f32 1.0, %v303
        %v305 = vrcp.pop %v271
        %v306 = vmul.f32 %v271, %v305
        %v307 = vsub.f32 1.0, %v306
        %v308 = vmul.f32 %v305, %v307
        %v309 = vadd.f32 %v305, %v308
        %vm310 = vweird.f32 %v271
        %vm311 = vweird.f32 %v305
        %vm312 = vmor %vm310, %vm311
        %v313 = vsel %vm312, %v305, %v309
        %v314 = vand.u32 2147483647, %v271
        %vm315 = vcmp.eq.f32.partialorder %v314, 8.507059e+37
        %v316 = vand.u32 %v271, 2147483648
        %v317 = vor.u32 1.1754944e-38, %v316
        %v318 = vsel %vm315, %v317, %v313
        %v319 = vmul.f32 1.0, %v318
        %v320 = vrcp.pop %v272
        %v321 = vmul.f32 %v272, %v320
        %v322 = vsub.f32 1.0, %v321
        %v323 = vmul.f32 %v320, %v322
        %v324 = vadd.f32 %v320, %v323
        %vm325 = vweird.f32 %v272
        %vm326 = vweird.f32 %v320
        %vm327 = vmor %vm325, %vm326
        %v328 = vsel %vm327, %v320, %v324
        %v329 = vand.u32 2147483647, %v272
        %vm330 = vcmp.eq.f32.partialorder %v329, 8.507059e+37
        %v331 = vand.u32 %v272, 2147483648
        %v332 = vor.u32 1.1754944e-38, %v331
        %v333 = vsel %vm330, %v332, %v328
        %v334 = vmul.f32 1.0, %v333
        %v335 = vrcp.pop %v273
        %v336 = vmul.f32 %v273, %v335
        %v337 = vsub.f32 1.0, %v336
        %v338 = vmul.f32 %v335, %v337
        %v339 = vadd.f32 %v335, %v338
        %vm340 = vweird.f32 %v273
        %vm341 = vweird.f32 %v335
        %vm342 = vmor %vm340, %vm341
        %v343 = vsel %vm342, %v335, %v339
        %v344 = vand.u32 2147483647, %v273
        %vm345 = vcmp.eq.f32.partialorder %v344, 8.507059e+37
        %v346 = vand.u32 %v273, 2147483648
        %v347 = vor.u32 1.1754944e-38, %v346
        %v348 = vsel %vm345, %v347, %v343
        %v349 = vmul.f32 1.0, %v348
        %v350 = vrcp.pop %v274
        %v351 = vmul.f32 %v274, %v350
        %v352 = vsub.f32 1.0, %v351
        %v353 = vmul.f32 %v350, %v352
        %v354 = vadd.f32 %v350, %v353
        %vm355 = vweird.f32 %v274
        %vm356 = vweird.f32 %v350
        %vm357 = vmor %vm355, %vm356
        %v358 = vsel %vm357, %v350, %v354
        %v359 = vand.u32 2147483647, %v274
        %vm360 = vcmp.eq.f32.partialorder %v359, 8.507059e+37
        %v361 = vand.u32 %v274, 2147483648
        %v362 = vor.u32 1.1754944e-38, %v361
        %v363 = vsel %vm360, %v362, %v358
        %v364 = vmul.f32 1.0, %v363
        %v365 = vld [vmem:[%s3] sm:$0xff]
        %367 = vset.pattern.permute.xlu0 0
        %368 = vperm.xlu0 %367, %v365
        %v369 = vpop.permute.xlu0 %368
        %v371 = vmul.f32 %v245, %v369
        %v372 = vmul.f32 %v246, %v369
        %v373 = vmul.f32 %v247, %v369
        %v374 = vmul.f32 %v248, %v369
        %v375 = vmul.f32 %v249, %v369
        %v376 = vmul.f32 %v250, %v369
        %v377 = vmul.f32 %v371, 1.442695
        %v378 = vpow.pop %v377
        %v379 = vmul.f32 %v372, 1.442695
        %v380 = vpow.pop %v379
        %v381 = vmul.f32 %v373, 1.442695
        %v382 = vpow.pop %v381
        %v383 = vmul.f32 %v374, 1.442695
        %v384 = vpow.pop %v383
        %v385 = vmul.f32 %v375, 1.442695
        %v386 = vpow.pop %v385
        %v387 = vmul.f32 %v376, 1.442695
        %v388 = vpow.pop %v387
        %v389 = vld [vmem:[%s1] sm:$0xff]
        %v390 = vld [vmem:[%s1 + $0x8] sm:$0xff]
        %v391 = vld [vmem:[%s1 + $0x10] sm:$0xff]
        %393 = vset.pattern.permute.xlu0 0
        %394 = vperm.xlu0 %393, %v389
        %v395 = vpop.permute.xlu0 %394
        %398 = vset.pattern.permute.xlu0 0
        %399 = vperm.xlu0 %398, %v390
        %v400 = vpop.permute.xlu0 %399
        %403 = vset.pattern.permute.xlu0 0
        %404 = vperm.xlu0 %403, %v391
        %v405 = vpop.permute.xlu0 %404
        %v407 = vmul.f32 %v289, %v395
        %v408 = vmul.f32 %v304, %v395
        %v409 = vmul.f32 %v319, %v400
        %v410 = vmul.f32 %v334, %v400
        %v411 = vmul.f32 %v349, %v405
        %v412 = vmul.f32 %v364, %v405
        %v413 = vld [vmem:[%s2] sm:$0xff]
        %v414 = vld [vmem:[%s2 + $0x8] sm:$0xff]
        %v415 = vld [vmem:[%s2 + $0x10] sm:$0xff]
        %417 = vset.pattern.permute.xlu0 0
        %418 = vperm.xlu0 %417, %v413
        %v419 = vpop.permute.xlu0 %418
        %422 = vset.pattern.permute.xlu0 0
        %423 = vperm.xlu0 %422, %v414
        %v424 = vpop.permute.xlu0 %423
        %427 = vset.pattern.permute.xlu0 0
        %428 = vperm.xlu0 %427, %v415
        %v429 = vpop.permute.xlu0 %428
        %v431 = vmul.f32 %v378, %v419
        %v432 = vmul.f32 %v380, %v419
        %v433 = vmul.f32 %v382, %v424
        %v434 = vmul.f32 %v384, %v424
        %v435 = vmul.f32 %v386, %v429
        %v436 = vmul.f32 %v388, %v429
        %v437 = vadd.f32 %v407, %v431
        %v438 = vadd.f32 %v408, %v432
        %v439 = vadd.f32 %v409, %v433
        %v440 = vadd.f32 %v410, %v434
        %v441 = vadd.f32 %v411, %v435
        %v442 = vadd.f32 %v412, %v436
        %v443 = vld [vmem:[%s4] sm:$0xff]
        %v444 = vld [vmem:[%s4 + $0x8] sm:$0xff]
        %v445 = vadd.f32 %v437, %v443
        %v446 = vadd.f32 %v438, %v444
        %v447 = vadd.f32 %v439, %v443
        %v448 = vadd.f32 %v440, %v444
        %v449 = vadd.f32 %v441, %v443
        %v450 = vadd.f32 %v442, %v444
        %451 = vst [vmem:[%s244] sm:$0xff] %v445
        %452 = vst [vmem:[%s244 + $0x8] sm:$0xff] %v446
        %453 = vst [vmem:[%s244 + $0x10] sm:$0xff] %v447
        %454 = vst [vmem:[%s244 + $0x18] sm:$0xff] %v448
        %455 = vst [vmem:[%s244 + $0x20] sm:$0xff] %v449
        %456 = vst [vmem:[%s244 + $0x28] sm:$0xff] %v450
        %s457 = sand.u32 %s140, 1
        %s458 = scalar_lea.sflag [#allocation4], %s457
        %s459 = sand.u32 %s140, 1
        %s460 = smul.addr %s459, 48
        %s461 = scalar_lea.vmem [#allocation5], %s460
        // Predicated region
        $region45: #{tpu_custom_call.1} parent=39 // pred_check
          %p462 = pneg %p150
        $region46: #{tpu_custom_call.1} parent=39 // pred_check_branch
          %464 = sbr.rel (%p462) target = $region48
        $region47: #{tpu_custom_call.1} parent=39 // pred_region
          %466 = vsyncadd %s458, 0
          %s467 = smul.addr %s22, 6
          %s468 = smul.addr %s467, 8
          %s469 = scalar_lea.hbm %s5, %s468
          %s470 = sshll.u32 %s461, 4
          %s471 = int_to_ptr.vmem [resolvable:$true] %s470
          %s472 = sshll.u32 %s469, 4
          %s473 = int_to_ptr.hbm [resolvable:$true] %s472
          %478 = dma.vmem_to_hbm [thread:$0]  %s471, 768, %s473, %s458, 256, 256, 16
        $region48: #{tpu_custom_call.1} parent=39 // pred_fallthru
          _
      $region40: #{tpu_custom_call.1} parent=5 // pred_fallthru
        _
      %p479 = scmp.le.s32.totalorder 2, %s17
      // Predicated region
      $region49: #{tpu_custom_call.1} parent=5 // pred_check
        %p480 = pneg %p479
      $region50: #{tpu_custom_call.1} parent=5 // pred_check_branch
        %482 = sbr.rel (%p480) target = $region52
      $region51: #{tpu_custom_call.1} parent=5 // pred_region
        %s483 = ssub.s32 %s17, 2
        // Predicated region
        $region53: #{tpu_custom_call.1} parent=51 // pred_check
          %p484 = pneg %p156
        $region54: #{tpu_custom_call.1} parent=51 // pred_check_branch
          %486 = sbr.rel (%p484) target = $region56
        $region55: #{tpu_custom_call.1} parent=51 // pred_region
          %s487 = sand.u32 %s141, 1
          %s488 = scalar_lea.sflag [#allocation4], %s487
          %s489 = sand.u32 %s141, 1
          %s490 = smul.addr %s489, 48
          %s491 = scalar_lea.vmem [#allocation5], %s490
          %493 = dma.done %s488, 768
        $region56: #{tpu_custom_call.1} parent=51 // pred_fallthru
          _
      $region52: #{tpu_custom_call.1} parent=5 // pred_fallthru
        _
    $region6: #{tpu_custom_call.1} parent=1 // loop_footer
      %s21 = sadd.s32 1, %s17
    $region7: #{tpu_custom_call.1} parent=1 // loop_footer_branch
      %16 = sbr.rel target = $region3
    $region8: #{tpu_custom_call.1} parent=1 // loop_exit
      _
    %494 = vsyncpa [#allocation3], 1
    %s495 = scalar_lea.sflag [#allocation3], 1
    %496 = vsyncpa %s495, 1
    %497 = vsyncpa [#allocation4], 1
    %s498 = scalar_lea.sflag [#allocation4], 1
    %499 = vsyncpa %s498, 1

</llo_original>
